<compile_context>
chip_gen: v6e
topology: v6e:2x2x1
jax: 0.10.0
libtpu: 0.0.40
codegen_flags: <defaults>
</compile_context>

<pallas_src>
import jax
import jax.numpy as jnp
from jax.experimental import pallas as pl
from jax.experimental.pallas import tpu as pltpu


def _diffmixer_kernel(x_ref, w0_ref, w1_ref, s0_ref, s1_ref, o_ref, prev_col_ref):
    """One (batch, lane-tile) block.

    x_ref : (C, L) f32      lane tile of one batch (residual + matmul input)
    w0_ref, w1_ref : (C, C) bf16   BN-folded 1x1-conv weights (identity / diff branch)
    s0_ref, s1_ref : (C, 1) f32    BN-folded shifts (conv bias + BN mean/beta)
    o_ref : (C, L) f32
    prev_col_ref : (C, 1) f32 VMEM scratch — last lane column of the previous tile of
        the same batch, so the diff needs no halo at lane-tile edges.
    """
    t_idx = pl.program_id(1)
    x = x_ref[...]                                       # (C, L) f32
    C, L = x.shape

    # torch.diff along T with replicate-left-pad, tiled along lanes:
    #   d[:, j] = x[:, j] - x[:, j-1]     (j >= 1: XLU roll, VPU sub)
    #   d[:, 0] = x[:, 0] - carry         (tile start, carry from previous tile)
    #   d[:, 0] = x[:, 1] - x[:, 0]       (batch start: replicate pad of the diff)
    d_all = x - pltpu.roll(x, shift=1, axis=1)           # lane 0 wraps -> masked below
    col0 = jnp.where(t_idx == 0,
                     x_ref[:, 1:2] - x_ref[:, 0:1],      # replicate-pad value
                     x_ref[:, 0:1] - prev_col_ref[...])  # cross-tile diff
    lane0 = jax.lax.broadcasted_iota(jnp.int32, (1, L), 1) == 0   # (1, L) strip mask
    d = jnp.where(lane0, col0, d_all)

    # carry the last lane of this tile for the next tile of the same batch
    prev_col_ref[...] = x_ref[:, L - 1:L]

    # two independent (C, C) @ (C, L) 1x1 convs (bf16 operands, f32 MXU accumulation)
    y0 = jnp.dot(w0_ref[...], x.astype(jnp.bfloat16),
                 preferred_element_type=jnp.float32) + s0_ref[...]
    y1 = jnp.dot(w1_ref[...], d.astype(jnp.bfloat16),
                 preferred_element_type=jnp.float32) + s1_ref[...]

    # GELU (tanh approximation -> EUP slot); PyTorch default is exact erf (diff ~1e-3)
    g0 = jax.nn.gelu(y0, approximate=True)
    g1 = jax.nn.gelu(y1, approximate=True)

    o_ref[...] = (x + g0 + g1).astype(o_ref.dtype)


def _pick_lane_tile(T, max_tile=2048):
    """Largest lane tile that divides T, is a multiple of 128 and <= max_tile.
    Falls back to full T (always legal: block dim == full array dim)."""
    if T % 128 == 0:
        for cand in range(min(T, max_tile), 0, -128):
            if T % cand == 0:
                return cand
    return T


def diffmixer_pallas(x, params, *, lane_tile=None):
    """x: (B, C, T) float32.  params: dict with folded w0f/w1f/shift0/shift1."""
    B, C, T = x.shape
    assert T >= 2, "T == 1 makes torch.diff empty; unsupported degenerate case"
    L = lane_tile if lane_tile is not None else _pick_lane_tile(T)
    assert T % L == 0, "lane tile must divide T (tile edges handled via carry scratch)"
    nt = T // L

    cost = pl.CostEstimate(
        flops=4 * C * C * B * T,                     # two (C,C)@(C,T) matmuls per batch
        transcendentals=2 * B * C * T,               # tanh-GELU on both branches
        bytes_accessed=2 * B * C * T * 4 + 2 * C * C * 2 + 2 * C * 4,
    )

    # rough live-VMEM bound: double-buffered in/out x blocks + resident weights/shifts
    # + ~6 full-tile f32 temporaries; clamped well under v7x's 64 MiB physical VMEM.
    block_bytes = C * L * 4
    vmem_limit = min(max(12 * block_bytes + 4 * C * C * 2 + (2 << 20), 16 << 20), 48 << 20)

    return pl.pallas_call(
        _diffmixer_kernel,
        out_shape=jax.ShapeDtypeStruct((B, C, T), x.dtype),
        grid=(B, nt),
        in_specs=[
            pl.BlockSpec((pl.Squeezed(), C, L), lambda b, t: (b, 0, t)),  # x
            pl.BlockSpec((C, C), lambda b, t: (0, 0)),                    # w0f (resident)
            pl.BlockSpec((C, C), lambda b, t: (0, 0)),                    # w1f (resident)
            pl.BlockSpec((C, 1), lambda b, t: (0, 0)),                    # shift0
            pl.BlockSpec((C, 1), lambda b, t: (0, 0)),                    # shift1
        ],
        out_specs=pl.BlockSpec((pl.Squeezed(), C, L), lambda b, t: (b, 0, t)),
        scratch_shapes=[pltpu.VMEM((C, 1), jnp.float32)],                 # diff carry
        compiler_params=pltpu.CompilerParams(
            dimension_semantics=("parallel", "arbitrary"),
            vmem_limit_bytes=int(vmem_limit),
        ),
        cost_estimate=cost,
    )(x, params["w0f"], params["w1f"], params["shift0"], params["shift1"])


def init_params(key, dim):
    """Deterministic synthetic parameters with host-side BN folding.

    Raw module params: pre_norm BN(dim); per branch i: Conv1d(dim,dim,1) weight
    (out,in,1) squeezed to (dim,dim) + bias (dim,), BN(dim).  Eval-mode BN folds to
    scale = g/sqrt(var+eps), shift = b - mean*scale.  Kernel folding:
      w0f = diag(s0) @ W0 @ diag(pre_s) ; shift0 = s0*(W0 @ pre_t) + (b0 - mean0)*s0 + beta0
      w1f = diag(s1) @ W1 @ diag(pre_s) ; shift1 =                   (b1 - mean1)*s1 + beta1
    (pre_t cancels under diff since diff(pre_s*x + pre_t) = pre_s*diff(x)).
    """
    eps = 1e-5
    ks = jax.random.split(key, 16)

    def bn_raw(k0, k1, k2, k3):
        gamma = 1.0 + 0.1 * jax.random.normal(k0, (dim,), jnp.float32)
        beta = 0.1 * jax.random.normal(k1, (dim,), jnp.float32)
        mean = 0.1 * jax.random.normal(k2, (dim,), jnp.float32)
        var = 1.0 + 0.1 * jax.random.uniform(k3, (dim,), jnp.float32)
        return gamma, beta, mean, var

    def fold(gamma, beta, mean, var, conv_bias=None):
        scale = gamma / jnp.sqrt(var + eps)
        base = conv_bias if conv_bias is not None else jnp.zeros((dim,), jnp.float32)
        shift = (base - mean) * scale + beta
        return scale, shift

    pre_s, pre_t = fold(*bn_raw(ks[0], ks[1], ks[2], ks[3]))

    w0 = 0.1 * jax.random.normal(ks[4], (dim, dim), jnp.float32)
    b0 = 0.1 * jax.random.normal(ks[5], (dim,), jnp.float32)
    s0, t0 = fold(*bn_raw(ks[6], ks[7], ks[8], ks[9]), conv_bias=b0)

    w1 = 0.1 * jax.random.normal(ks[10], (dim, dim), jnp.float32)
    b1 = 0.1 * jax.random.normal(ks[11], (dim,), jnp.float32)
    s1, t1 = fold(*bn_raw(ks[12], ks[13], ks[14], ks[15]), conv_bias=b1)

    w0f = ((s0[:, None] * w0) * pre_s[None, :]).astype(jnp.bfloat16)   # (C, C) bf16
    w1f = ((s1[:, None] * w1) * pre_s[None, :]).astype(jnp.bfloat16)   # (C, C) bf16
    shift0 = (s0 * (w0 @ pre_t) + t0).reshape(dim, 1)
    shift1 = t1.reshape(dim, 1)

    return dict(
        # kernel params
        w0f=w0f, w1f=w1f, shift0=shift0, shift1=shift1,
        # reference (un-fused, f32) params
        pre_s=pre_s.reshape(dim, 1), pre_t=pre_t.reshape(dim, 1),
        w0=w0, w1=w1,
        s0=s0.reshape(dim, 1), t0=t0.reshape(dim, 1),
        s1=s1.reshape(dim, 1), t1=t1.reshape(dim, 1),
    )


def diffmixer_reference(x, params):
    """Pure-JAX f32 reference mirroring the PyTorch forward (eval mode, exact-erf GELU)."""
    xn = x * params["pre_s"][None] + params["pre_t"][None]                 # (B,C,T)
    raw = xn[:, :, 1:] - xn[:, :, :-1]
    d = jnp.concatenate([raw[:, :, :1], raw], axis=2)                      # replicate left pad

    def branch(z, w, s, t):
        y = jnp.einsum("oc,bct->bot", w, z)
        y = y * s[None] + t[None]
        return jax.nn.gelu(y, approximate=False)

    y0 = branch(xn, params["w0"], params["s0"], params["t0"])
    y1 = branch(d, params["w1"], params["s1"], params["t1"])
    return x + y0 + y1


if __name__ == "__main__":
    # small shapes: batch=2, dim=32, seq=256, lane_tile=128 -> grid (2, 2)
    # (exercises both the batch-parallel axis and the cross-tile diff carry path)
    B, C, T = 2, 32, 256
    key = jax.random.PRNGKey(0)
    k_x, k_p = jax.random.split(key)
    x = jax.random.normal(k_x, (B, C, T), jnp.float32)
    params = init_params(k_p, C)

    out = diffmixer_pallas(x, params, lane_tile=128)
    out = jax.block_until_ready(out)

    ref = diffmixer_reference(x, params)
    assert out.shape == (B, C, T)
    # Tolerance 2e-2: kernel uses bf16 MXU operands (f32 accumulation) and tanh-approx
    # GELU; reference stays f32 / exact-erf.
    max_err = jnp.max(jnp.abs(out - ref))
    assert jnp.allclose(out, ref, rtol=2e-2, atol=2e-2), f"max err {max_err}"

    print("KERNEL_OK")
</pallas_src>

<mosaic_0001>
module attributes {stable_mosaic.version = 11 : i64} {
  func.func @_diffmixer_kernel(%arg0: i32, %arg1: i32, %arg2: memref<1x32x128xf32, #tpu.memory_space<vmem>>, %arg3: memref<32x32xbf16, #tpu.memory_space<vmem>>, %arg4: memref<32x32xbf16, #tpu.memory_space<vmem>>, %arg5: memref<32x1xf32, #tpu.memory_space<vmem>>, %arg6: memref<32x1xf32, #tpu.memory_space<vmem>>, %arg7: memref<1x32x128xf32, #tpu.memory_space<vmem>>, %arg8: memref<32x1xf32, #tpu.memory_space<vmem>>) attributes {dimension_semantics = [#tpu.dimension_semantics<parallel>, #tpu.dimension_semantics<arbitrary>], iteration_bounds = array<i64: 2, 2>, scalar_prefetch = 0 : i64, scratch_operands = 1 : i64, tpu.core_type = #tpu.core_type<tc>, window_params = [{transform_indices = @transform_0, window_bounds = array<i64: 1, 32, 128>}, {pipeline_mode = #tpu.pipeline_mode<synchronous>, transform_indices = @transform_1, window_bounds = array<i64: 32, 32>}, {pipeline_mode = #tpu.pipeline_mode<synchronous>, transform_indices = @transform_2, window_bounds = array<i64: 32, 32>}, {pipeline_mode = #tpu.pipeline_mode<synchronous>, transform_indices = @transform_3, window_bounds = array<i64: 32, 1>}, {pipeline_mode = #tpu.pipeline_mode<synchronous>, transform_indices = @transform_4, window_bounds = array<i64: 32, 1>}, {transform_indices = @transform_5, window_bounds = array<i64: 1, 32, 128>}]} {
    %c0 = arith.constant 0 : index
    %c0_0 = arith.constant 0 : index
    %c0_1 = arith.constant 0 : index
    %0 = vector.load %arg2[%c0, %c0_0, %c0_1] : memref<1x32x128xf32, #tpu.memory_space<vmem>>, vector<1x32x128xf32>
    %1 = vector.shape_cast %0 : vector<1x32x128xf32> to vector<32x128xf32>
    %c1_i32 = arith.constant 1 : i32
    %2 = tpu.dynamic_rotate %1 by %c1_i32 dim 1 : vector<32x128xf32>, i32 -> vector<32x128xf32>
    %3 = arith.subf %1, %2 : vector<32x128xf32>
    %c0_i32 = arith.constant 0 : i32
    %4 = arith.cmpi eq, %arg1, %c0_i32 : i32
    %c0_2 = arith.constant 0 : index
    %c0_3 = arith.constant 0 : index
    %c1 = arith.constant 1 : index
    %5 = vector.load %arg2[%c0_2, %c0_3, %c1] : memref<1x32x128xf32, #tpu.memory_space<vmem>>, vector<1x32x1xf32>
    %6 = vector.shape_cast %5 : vector<1x32x1xf32> to vector<32x1xf32>
    %c0_4 = arith.constant 0 : index
    %c0_5 = arith.constant 0 : index
    %c0_6 = arith.constant 0 : index
    %7 = vector.load %arg2[%c0_4, %c0_5, %c0_6] : memref<1x32x128xf32, #tpu.memory_space<vmem>>, vector<1x32x1xf32>
    %8 = vector.shape_cast %7 : vector<1x32x1xf32> to vector<32x1xf32>
    %9 = arith.subf %6, %8 : vector<32x1xf32>
    %c0_7 = arith.constant 0 : index
    %c0_8 = arith.constant 0 : index
    %c0_9 = arith.constant 0 : index
    %10 = vector.load %arg2[%c0_7, %c0_8, %c0_9] : memref<1x32x128xf32, #tpu.memory_space<vmem>>, vector<1x32x1xf32>
    %11 = vector.shape_cast %10 : vector<1x32x1xf32> to vector<32x1xf32>
    %c0_10 = arith.constant 0 : index
    %c0_11 = arith.constant 0 : index
    %12 = vector.load %arg8[%c0_10, %c0_11] : memref<32x1xf32, #tpu.memory_space<vmem>>, vector<32x1xf32>
    %13 = arith.subf %11, %12 : vector<32x1xf32>
    %14 = arith.select %4, %9, %13 : vector<32x1xf32>
    %15 = tpu.iota {dimensions = array<i32: 1>} : vector<1x128xi32>
    %c0_i32_12 = arith.constant 0 : i32
    %16 = vector.broadcast %c0_i32_12 : i32 to vector<1x128xi32>
    %17 = arith.cmpi eq, %15, %16 : vector<1x128xi32>
    %18 = vector.shape_cast %17 : vector<1x128xi1> to vector<1x128xi1>
    %19 = vector.broadcast %18 : vector<1x128xi1> to vector<32x128xi1>
    %20 = vector.shape_cast %14 : vector<32x1xf32> to vector<32x1xf32>
    %21 = vector.broadcast %20 : vector<32x1xf32> to vector<32x128xf32>
    %22 = arith.select %19, %21, %3 : vector<32x128xi1>, vector<32x128xf32>
    %c0_13 = arith.constant 0 : index
    %c0_14 = arith.constant 0 : index
    %c127 = arith.constant 127 : index
    %23 = vector.load %arg2[%c0_13, %c0_14, %c127] : memref<1x32x128xf32, #tpu.memory_space<vmem>>, vector<1x32x1xf32>
    %24 = vector.shape_cast %23 : vector<1x32x1xf32> to vector<32x1xf32>
    %c0_15 = arith.constant 0 : index
    %c0_16 = arith.constant 0 : index
    %25 = vector.load %arg8[%c0_15, %c0_16] : memref<32x1xf32, #tpu.memory_space<vmem>>, vector<32x1xf32>
    tpu.vector_store %arg8[%c0_15, %c0_16], %24 {strides = array<i32>} : memref<32x1xf32, #tpu.memory_space<vmem>>, vector<32x1xf32>,
    %c0_17 = arith.constant 0 : index
    %c0_18 = arith.constant 0 : index
    %26 = vector.load %arg3[%c0_17, %c0_18] : memref<32x32xbf16, #tpu.memory_space<vmem>>, vector<32x32xbf16>
    %27 = arith.truncf %1 : vector<32x128xf32> to vector<32x128xbf16>
    %cst = arith.constant dense<0.000000e+00> : vector<32x128xf32>
    %28 = tpu.matmul %26, %27, %cst {dimension_numbers = #tpu.dot_dimension_numbers<[1], [0], [0], [1], [0, 0, 1, 1], [], []>} : vector<32x32xbf16>, vector<32x128xbf16>, vector<32x128xf32> -> vector<32x128xf32>
    %c0_19 = arith.constant 0 : index
    %c0_20 = arith.constant 0 : index
    %29 = vector.load %arg5[%c0_19, %c0_20] : memref<32x1xf32, #tpu.memory_space<vmem>>, vector<32x1xf32>
    %30 = vector.broadcast %29 : vector<32x1xf32> to vector<32x128xf32>
    %31 = arith.addf %28, %30 : vector<32x128xf32>
    %c0_21 = arith.constant 0 : index
    %c0_22 = arith.constant 0 : index
    %32 = vector.load %arg4[%c0_21, %c0_22] : memref<32x32xbf16, #tpu.memory_space<vmem>>, vector<32x32xbf16>
    %33 = arith.truncf %22 : vector<32x128xf32> to vector<32x128xbf16>
    %cst_23 = arith.constant dense<0.000000e+00> : vector<32x128xf32>
    %34 = tpu.matmul %32, %33, %cst_23 {dimension_numbers = #tpu.dot_dimension_numbers<[1], [0], [0], [1], [0, 0, 1, 1], [], []>} : vector<32x32xbf16>, vector<32x128xbf16>, vector<32x128xf32> -> vector<32x128xf32>
    %c0_24 = arith.constant 0 : index
    %c0_25 = arith.constant 0 : index
    %35 = vector.load %arg6[%c0_24, %c0_25] : memref<32x1xf32, #tpu.memory_space<vmem>>, vector<32x1xf32>
    %36 = vector.broadcast %35 : vector<32x1xf32> to vector<32x128xf32>
    %37 = arith.addf %34, %36 : vector<32x128xf32>
    %38 = arith.mulf %31, %31 : vector<32x128xf32>
    %39 = arith.mulf %31, %38 : vector<32x128xf32>
    %cst_26 = arith.constant 4.471500e-02 : f32
    %40 = vector.broadcast %cst_26 : f32 to vector<32x128xf32>
    %41 = arith.mulf %40, %39 : vector<32x128xf32>
    %42 = arith.addf %31, %41 : vector<32x128xf32>
    %cst_27 = arith.constant 0.797884583 : f32
    %43 = vector.broadcast %cst_27 : f32 to vector<32x128xf32>
    %44 = arith.mulf %43, %42 : vector<32x128xf32>
    %45 = math.tanh %44 : vector<32x128xf32>
    %cst_28 = arith.constant 1.000000e+00 : f32
    %46 = vector.broadcast %cst_28 : f32 to vector<32x128xf32>
    %47 = arith.addf %46, %45 : vector<32x128xf32>
    %cst_29 = arith.constant 5.000000e-01 : f32
    %48 = vector.broadcast %cst_29 : f32 to vector<32x128xf32>
    %49 = arith.mulf %48, %47 : vector<32x128xf32>
    %50 = arith.mulf %31, %49 : vector<32x128xf32>
    %51 = arith.mulf %37, %37 : vector<32x128xf32>
    %52 = arith.mulf %37, %51 : vector<32x128xf32>
    %cst_30 = arith.constant 4.471500e-02 : f32
    %53 = vector.broadcast %cst_30 : f32 to vector<32x128xf32>
    %54 = arith.mulf %53, %52 : vector<32x128xf32>
    %55 = arith.addf %37, %54 : vector<32x128xf32>
    %cst_31 = arith.constant 0.797884583 : f32
    %56 = vector.broadcast %cst_31 : f32 to vector<32x128xf32>
    %57 = arith.mulf %56, %55 : vector<32x128xf32>
    %58 = math.tanh %57 : vector<32x128xf32>
    %cst_32 = arith.constant 1.000000e+00 : f32
    %59 = vector.broadcast %cst_32 : f32 to vector<32x128xf32>
    %60 = arith.addf %59, %58 : vector<32x128xf32>
    %cst_33 = arith.constant 5.000000e-01 : f32
    %61 = vector.broadcast %cst_33 : f32 to vector<32x128xf32>
    %62 = arith.mulf %61, %60 : vector<32x128xf32>
    %63 = arith.mulf %37, %62 : vector<32x128xf32>
    %64 = arith.addf %1, %50 : vector<32x128xf32>
    %65 = arith.addf %64, %63 : vector<32x128xf32>
    %c0_34 = arith.constant 0 : index
    %c0_35 = arith.constant 0 : index
    %c0_36 = arith.constant 0 : index
    %66 = vector.load %arg7[%c0_34, %c0_35, %c0_36] : memref<1x32x128xf32, #tpu.memory_space<vmem>>, vector<1x32x128xf32>
    %67 = vector.shape_cast %66 : vector<1x32x128xf32> to vector<32x128xf32>
    %68 = vector.shape_cast %65 : vector<32x128xf32> to vector<1x32x128xf32>
    tpu.vector_store %arg7[%c0_34, %c0_35, %c0_36], %68 {strides = array<i32>} : memref<1x32x128xf32, #tpu.memory_space<vmem>>, vector<1x32x128xf32>,
    return
  }
  func.func @transform_0(%arg0: i32, %arg1: i32) -> (i32, i32, i32) {
    %c0_i32 = arith.constant 0 : i32
    %c0_i32_0 = arith.constant 0 : i32
    return %arg0, %c0_i32, %arg1 : i32, i32, i32
  }
  func.func @transform_1(%arg0: i32, %arg1: i32) -> (i32, i32) {
    %c0_i32 = arith.constant 0 : i32
    %c0_i32_0 = arith.constant 0 : i32
    %c0_i32_1 = arith.constant 0 : i32
    return %c0_i32, %c0_i32_0 : i32, i32
  }
  func.func @transform_2(%arg0: i32, %arg1: i32) -> (i32, i32) {
    %c0_i32 = arith.constant 0 : i32
    %c0_i32_0 = arith.constant 0 : i32
    %c0_i32_1 = arith.constant 0 : i32
    return %c0_i32, %c0_i32_0 : i32, i32
  }
  func.func @transform_3(%arg0: i32, %arg1: i32) -> (i32, i32) {
    %c0_i32 = arith.constant 0 : i32
    %c0_i32_0 = arith.constant 0 : i32
    %c0_i32_1 = arith.constant 0 : i32
    return %c0_i32, %c0_i32_0 : i32, i32
  }
  func.func @transform_4(%arg0: i32, %arg1: i32) -> (i32, i32) {
    %c0_i32 = arith.constant 0 : i32
    %c0_i32_0 = arith.constant 0 : i32
    %c0_i32_1 = arith.constant 0 : i32
    return %c0_i32, %c0_i32_0 : i32, i32
  }
  func.func @transform_5(%arg0: i32, %arg1: i32) -> (i32, i32, i32) {
    %c0_i32 = arith.constant 0 : i32
    %c0_i32_0 = arith.constant 0 : i32
    return %arg0, %c0_i32, %arg1 : i32, i32, i32
  }
}

</mosaic_0001>

<llo_original>
// kernel: tpu_custom_call.1
$region0: #{tpu_custom_call.1}
  #allocation0 [shape = 'u32[]', space=smem, size = 0x4, offset = 0x4, fixed_abs, tag = 'smem constant byte address 0x4 - core index']
  #allocation1 [shape = 'u32[144,128]{1,0:T(1,128)}', space=vmem, size = 0x12000, scoped, tag = 'internal scratch']
  #allocation2 [shape = 'f32[32,1]{1,0:T(8,128)}', space=vmem, size = 0x4000, scoped, tag = 'scratch operand']
  %s0 = inlined_call_operand.hbm [shape: f32[2,32,256], index: 0, kind: input, shape index: {}]
  %s1 = inlined_call_operand.vmem [shape: bf16[32,32], index: 1, kind: input, shape index: {}]
  %s2 = inlined_call_operand.vmem [shape: bf16[32,32], index: 2, kind: input, shape index: {}]
  %s3 = inlined_call_operand.vmem [shape: f32[32,1], index: 3, kind: input, shape index: {}]
  %s4 = inlined_call_operand.vmem [shape: f32[32,1], index: 4, kind: input, shape index: {}]
  %s5 = inlined_call_operand.hbm [shape: f32[2,32,256], index: 5, kind: output, shape index: {}]
  %s6 = sld [smem:[#allocation0]]
  $region57: #{tpu_custom_call.1} parent=0
    _
  %s8 = ssub.s32 1, %s6
  %s9 = scalar_select 0, %s8, %s6
  $region1: #{tpu_custom_call.1} parent=0
    #allocation3 [shape = 'u8[32768]{0}', space=vmem, size = 0x8000, scoped, tag = 'input window, operand 0']
    #allocation4 [shape = 's32[2]{0}', space=sflag, size = 0x8, scoped, tag = 'scoped memory for tpu_custom_call.1']
    #allocation5 [shape = 's32[2]{0}', space=sflag, size = 0x8, scoped, tag = 'scoped memory for tpu_custom_call.1']
    #allocation6 [shape = 'u8[32768]{0}', space=vmem, size = 0x8000, scoped, tag = 'output window, operand 0']
    %10 = vsyncpa [#allocation4], 0
    %s11 = scalar_lea.sflag [#allocation4], 1
    %12 = vsyncpa %s11, 0
    %13 = vsyncpa [#allocation5], 0
    %s14 = scalar_lea.sflag [#allocation5], 1
    %15 = vsyncpa %s14, 0
    loop: start=0, step=1, limit=6
    $region2: #{tpu_custom_call.1} parent=1 // loop_pre_header
      _
    $region3: #{tpu_custom_call.1} parent=1 // loop_header
      %s17 = sphi 0, %s21
      %p18 = scmp.ge.s32.totalorder %s17, 6
      %s24 = sphi 0, %s36
      %s25 = sphi 0, %s32
      %s26 = sphi 0, %s24
      %s27 = sphi 0, %s25
      %s28 = sphi 0, %s26
      %s29 = sphi 0, %s27
      %s41 = sphi 0, %s43
      %s44 = sphi 0, %s41
      %s45 = sphi 0, %s44
      %s61 = sphi 0, %s45
      %s65 = sphi 0, %s65
      %s67 = sphi 0, %s65
      %s68 = sphi 0, %s67
      %s82 = sphi 0, %s68
      %s86 = sphi 0, %s86
      %s88 = sphi 0, %s86
      %s89 = sphi 0, %s88
      %s103 = sphi 0, %s89
      %s107 = sphi 0, %s107
      %s109 = sphi 0, %s107
      %s110 = sphi 0, %s109
      %s124 = sphi 0, %s110
      %s128 = sphi 0, %s128
      %s130 = sphi 0, %s128
      %s131 = sphi 0, %s130
      %s145 = sphi 0, %s131
      %s153 = sphi 0, %s155
      %s156 = sphi 0, %s153
      %s157 = sphi 0, %s156
      %s173 = sphi 0, %s157
    $region4: #{tpu_custom_call.1} parent=1 // loop_header_branch
      %20 = sbr.rel (%p18) target = $region8
    $region5: #{tpu_custom_call.1} parent=1 // loop_body
      %s22 = ssub.s32 %s17, 1
      %s23 = ssub.s32 %s17, 2
      %s30 = sadd.s32 1, %s25
      %p31 = scmp.ge.s32.totalorder %s30, 2
      %s32 = scalar_select %p31, 0, %s30
      %s33 = sadd.s32 1, %s24
      %s34 = scalar_select %p31, %s33, %s24
      %p35 = scmp.ge.s32.totalorder %s34, 2
      %s36 = scalar_select %p35, 0, %s34
      %s37 = ssub.s32 %s24, %s36
      %s38 = ssub.s32 %s25, %s32
      %s39 = sor.u32 %s37, %s38
      %p40 = scmp.eq.s32.totalorder %s39, 0
      %s42 = sadd.s32 %s41, 1
      %s43 = scalar_select %p40, %s41, %s42
      %p46 = pneg %p40
      %p47 = scmp.eq.s32.totalorder %s17, 3
      %p48 = por %p46, %p47
      %p49 = scmp.ne.s32.totalorder %s41, %s44
      %p50 = scmp.eq.s32.totalorder %s17, 0
      %p51 = por %p49, %p50
      %p52 = scmp.ne.s32.totalorder %s41, %s44
      %p53 = scmp.eq.s32.totalorder %s22, 3
      %p54 = por %p52, %p53
      %p55 = scmp.ne.s32.totalorder %s44, %s45
      %p56 = scmp.eq.s32.totalorder %s22, 0
      %p57 = por %p55, %p56
      %p58 = scmp.ne.s32.totalorder %s44, %s45
      %p59 = scmp.eq.s32.totalorder %s23, 3
      %p60 = por %p58, %p59
      %p62 = scmp.ne.s32.totalorder %s45, %s61
      %p63 = scmp.eq.s32.totalorder %s23, 0
      %p64 = por %p62, %p63
      %s66 = sadd.s32 %s65, 1
      %p69 = scmp.eq.s32.totalorder %s17, 3
      %p70 = scmp.ne.s32.totalorder %s65, %s67
      %p71 = scmp.eq.s32.totalorder %s17, 0
      %p72 = por %p70, %p71
      %p73 = scmp.ne.s32.totalorder %s65, %s67
      %p74 = scmp.eq.s32.totalorder %s22, 3
      %p75 = por %p73, %p74
      %p76 = scmp.ne.s32.totalorder %s67, %s68
      %p77 = scmp.eq.s32.totalorder %s22, 0
      %p78 = por %p76, %p77
      %p79 = scmp.ne.s32.totalorder %s67, %s68
      %p80 = scmp.eq.s32.totalorder %s23, 3
      %p81 = por %p79, %p80
      %p83 = scmp.ne.s32.totalorder %s68, %s82
      %p84 = scmp.eq.s32.totalorder %s23, 0
      %p85 = por %p83, %p84
      %s87 = sadd.s32 %s86, 1
      %p90 = scmp.eq.s32.totalorder %s17, 3
      %p91 = scmp.ne.s32.totalorder %s86, %s88
      %p92 = scmp.eq.s32.totalorder %s17, 0
      %p93 = por %p91, %p92
      %p94 = scmp.ne.s32.totalorder %s86, %s88
      %p95 = scmp.eq.s32.totalorder %s22, 3
      %p96 = por %p94, %p95
      %p97 = scmp.ne.s32.totalorder %s88, %s89
      %p98 = scmp.eq.s32.totalorder %s22, 0
      %p99 = por %p97, %p98
      %p100 = scmp.ne.s32.totalorder %s88, %s89
      %p101 = scmp.eq.s32.totalorder %s23, 3
      %p102 = por %p100, %p101
      %p104 = scmp.ne.s32.totalorder %s89, %s103
      %p105 = scmp.eq.s32.totalorder %s23, 0
      %p106 = por %p104, %p105
      %s108 = sadd.s32 %s107, 1
      %p111 = scmp.eq.s32.totalorder %s17, 3
      %p112 = scmp.ne.s32.totalorder %s107, %s109
      %p113 = scmp.eq.s32.totalorder %s17, 0
      %p114 = por %p112, %p113
      %p115 = scmp.ne.s32.totalorder %s107, %s109
      %p116 = scmp.eq.s32.totalorder %s22, 3
      %p117 = por %p115, %p116
      %p118 = scmp.ne.s32.totalorder %s109, %s110
      %p119 = scmp.eq.s32.totalorder %s22, 0
      %p120 = por %p118, %p119
      %p121 = scmp.ne.s32.totalorder %s109, %s110
      %p122 = scmp.eq.s32.totalorder %s23, 3
      %p123 = por %p121, %p122
      %p125 = scmp.ne.s32.totalorder %s110, %s124
      %p126 = scmp.eq.s32.totalorder %s23, 0
      %p127 = por %p125, %p126
      %s129 = sadd.s32 %s128, 1
      %p132 = scmp.eq.s32.totalorder %s17, 3
      %p133 = scmp.ne.s32.totalorder %s128, %s130
      %p134 = scmp.eq.s32.totalorder %s17, 0
      %p135 = por %p133, %p134
      %p136 = scmp.ne.s32.totalorder %s128, %s130
      %p137 = scmp.eq.s32.totalorder %s22, 3
      %p138 = por %p136, %p137
      %p139 = scmp.ne.s32.totalorder %s130, %s131
      %p140 = scmp.eq.s32.totalorder %s22, 0
      %p141 = por %p139, %p140
      %p142 = scmp.ne.s32.totalorder %s130, %s131
      %p143 = scmp.eq.s32.totalorder %s23, 3
      %p144 = por %p142, %p143
      %p146 = scmp.ne.s32.totalorder %s131, %s145
      %p147 = scmp.eq.s32.totalorder %s23, 0
      %p148 = por %p146, %p147
      %s149 = ssub.s32 %s24, %s36
      %s150 = ssub.s32 %s25, %s32
      %s151 = sor.u32 %s149, %s150
      %p152 = scmp.eq.s32.totalorder %s151, 0
      %s154 = sadd.s32 %s153, 1
      %s155 = scalar_select %p152, %s153, %s154
      %p158 = pneg %p152
      %p159 = scmp.eq.s32.totalorder %s17, 3
      %p160 = por %p158, %p159
      %p161 = scmp.ne.s32.totalorder %s153, %s156
      %p162 = scmp.eq.s32.totalorder %s17, 0
      %p163 = por %p161, %p162
      %p164 = scmp.ne.s32.totalorder %s153, %s156
      %p165 = scmp.eq.s32.totalorder %s22, 3
      %p166 = por %p164, %p165
      %p167 = scmp.ne.s32.totalorder %s156, %s157
      %p168 = scmp.eq.s32.totalorder %s22, 0
      %p169 = por %p167, %p168
      %p170 = scmp.ne.s32.totalorder %s156, %s157
      %p171 = scmp.eq.s32.totalorder %s23, 3
      %p172 = por %p170, %p171
      %p174 = scmp.ne.s32.totalorder %s157, %s173
      %p175 = scmp.eq.s32.totalorder %s23, 0
      %p176 = por %p174, %p175
      %p177 = scmp.le.s32.totalorder 1, %s17
      %p178 = scmp.lt.s32.totalorder %s17, 5
      %p179 = pnand %p177, %p178
      %p180 = pneg %p179
      // Predicated region
      $region9: #{tpu_custom_call.1} parent=5 // pred_check
        _
      $region10: #{tpu_custom_call.1} parent=5 // pred_check_branch
        %182 = sbr.rel (%p179) target = $region12
      $region11: #{tpu_custom_call.1} parent=5 // pred_region
        %s183 = ssub.s32 %s17, 1
        // Predicated region
        $region13: #{tpu_custom_call.1} parent=11 // pred_check
          %p184 = pneg %p78
        $region14: #{tpu_custom_call.1} parent=11 // pred_check_branch
          %186 = sbr.rel (%p184) target = $region16
        $region15: #{tpu_custom_call.1} parent=11 // pred_region
          _
        $region16: #{tpu_custom_call.1} parent=11 // pred_fallthru
          _
        // Predicated region
        $region17: #{tpu_custom_call.1} parent=11 // pred_check
          %p187 = pneg %p99
        $region18: #{tpu_custom_call.1} parent=11 // pred_check_branch
          %189 = sbr.rel (%p187) target = $region20
        $region19: #{tpu_custom_call.1} parent=11 // pred_region
          _
        $region20: #{tpu_custom_call.1} parent=11 // pred_fallthru
          _
        // Predicated region
        $region21: #{tpu_custom_call.1} parent=11 // pred_check
          %p190 = pneg %p120
        $region22: #{tpu_custom_call.1} parent=11 // pred_check_branch
          %192 = sbr.rel (%p190) target = $region24
        $region23: #{tpu_custom_call.1} parent=11 // pred_region
          _
        $region24: #{tpu_custom_call.1} parent=11 // pred_fallthru
          _
        // Predicated region
        $region25: #{tpu_custom_call.1} parent=11 // pred_check
          %p193 = pneg %p141
        $region26: #{tpu_custom_call.1} parent=11 // pred_check_branch
          %195 = sbr.rel (%p193) target = $region28
        $region27: #{tpu_custom_call.1} parent=11 // pred_region
          _
        $region28: #{tpu_custom_call.1} parent=11 // pred_fallthru
          _
      $region12: #{tpu_custom_call.1} parent=5 // pred_fallthru
        _
      %p196 = scmp.lt.s32.totalorder %s17, 4
      // Predicated region
      $region29: #{tpu_custom_call.1} parent=5 // pred_check
        %p197 = pneg %p196
      $region30: #{tpu_custom_call.1} parent=5 // pred_check_branch
        %199 = sbr.rel (%p197) target = $region32
      $region31: #{tpu_custom_call.1} parent=5 // pred_region
        // Predicated region
        $region33: #{tpu_custom_call.1} parent=31 // pred_check
          %p200 = pneg %p51
        $region34: #{tpu_custom_call.1} parent=31 // pred_check_branch
          %202 = sbr.rel (%p200) target = $region36
        $region35: #{tpu_custom_call.1} parent=31 // pred_region
          %s203 = sand.u32 %s41, 1
          %s204 = scalar_lea.sflag [#allocation4], %s203
          %s205 = sand.u32 %s41, 1
          %s206 = smul.addr %s205, 32
          %s207 = scalar_lea.vmem [#allocation3], %s206
          %s209 = ssub.s32 512, 512
          %210 = vsyncadd %s204, %s209
          %s211 = smul.addr %s24, 8
          %s212 = sadd.s32 %s25, %s211
          %s213 = smul.addr %s212, 128
          %s214 = scalar_lea.hbm %s0, %s213
          %s215 = sshll.u32 %s207, 4
          %s216 = int_to_ptr.vmem [resolvable:$true] %s215
          %221 = dma.hbm_to_vmem [thread:$0]  %s214, 512, %s216, %s204, 256, 128, 8
        $region36: #{tpu_custom_call.1} parent=31 // pred_fallthru
          _
      $region32: #{tpu_custom_call.1} parent=5 // pred_fallthru
        _
      %p222 = scmp.le.s32.totalorder 1, %s17
      %p223 = scmp.lt.s32.totalorder %s17, 5
      %p224 = pnand %p222, %p223
      %p225 = pneg %p224
      // Predicated region
      $region37: #{tpu_custom_call.1} parent=5 // pred_check
        _
      $region38: #{tpu_custom_call.1} parent=5 // pred_check_branch
        %227 = sbr.rel (%p224) target = $region40
      $region39: #{tpu_custom_call.1} parent=5 // pred_region
        %s228 = ssub.s32 %s17, 1
        %s229 = sand.u32 %s44, 1
        %s230 = scalar_lea.sflag [#allocation4], %s229
        %s231 = sand.u32 %s44, 1
        %s232 = smul.addr %s231, 32
        %s233 = scalar_lea.vmem [#allocation3], %s232
        // Predicated region
        $region41: #{tpu_custom_call.1} parent=39 // pred_check
          %p234 = pneg %p57
        $region42: #{tpu_custom_call.1} parent=39 // pred_check_branch
          %236 = sbr.rel (%p234) target = $region44
        $region43: #{tpu_custom_call.1} parent=39 // pred_region
          %237 = dma.done %s230, 512
        $region44: #{tpu_custom_call.1} parent=39 // pred_fallthru
          _
        %s238 = sand.u32 %s44, 1
        %s239 = scalar_lea.sflag [#allocation4], %s238
        %s240 = sand.u32 %s44, 1
        %s241 = smul.addr %s240, 32
        %s242 = scalar_lea.vmem [#allocation3], %s241
        %p243 = pneg %p57
        %p244 = pneg %p54
        %p245 = pneg %p78
        %p246 = pneg %p75
        %p247 = pneg %p99
        %p248 = pneg %p96
        %p249 = pneg %p120
        %p250 = pneg %p117
        %p251 = pneg %p141
        %p252 = pneg %p138
        %p253 = pneg %p169
        %p254 = pneg %p166
        %s255 = sand.u32 %s156, 1
        %s256 = scalar_lea.sflag [#allocation5], %s255
        %s257 = sand.u32 %s156, 1
        %s258 = smul.addr %s257, 32
        %s259 = scalar_lea.vmem [#allocation6], %s258
        %v261 = vld [vmem:[%s233] sm:$0xff]
        %v262 = vld [vmem:[%s233 + $0x8] sm:$0xff]
        %v263 = vld [vmem:[%s233 + $0x10] sm:$0xff]
        %v264 = vld [vmem:[%s233 + $0x18] sm:$0xff]
        %265 = vrot.lane.b32.xlu0 %v261, 1
        %v266 = vpop.permute.xlu0 %265
        %267 = vrot.lane.b32.xlu0 %v262, 1
        %v268 = vpop.permute.xlu0 %267
        %269 = vrot.lane.b32.xlu0 %v263, 1
        %v270 = vpop.permute.xlu0 %269
        %271 = vrot.lane.b32.xlu0 %v264, 1
        %v272 = vpop.permute.xlu0 %271
        %v273 = vsub.f32 %v261, %v266
        %v274 = vsub.f32 %v262, %v268
        %v275 = vsub.f32 %v263, %v270
        %v276 = vsub.f32 %v264, %v272
        %p277 = scmp.eq.s32.totalorder %s27, 0
        %282 = vrot.lane.b32.xlu0 %v261, 1
        %v283 = vpop.permute.xlu0 %282
        %284 = vrot.lane.b32.xlu0 %v262, 1
        %v285 = vpop.permute.xlu0 %284
        %286 = vrot.lane.b32.xlu0 %v263, 1
        %v287 = vpop.permute.xlu0 %286
        %288 = vrot.lane.b32.xlu0 %v264, 1
        %v289 = vpop.permute.xlu0 %288
        %v294 = vsub.f32 %v261, %v283
        %v295 = vsub.f32 %v262, %v285
        %v296 = vsub.f32 %v263, %v287
        %v297 = vsub.f32 %v264, %v289
        %v298 = vld [vmem:[#allocation2] sm:$0xff]
        %v299 = vld [vmem:[#allocation2 + $0x8] sm:$0xff]
        %v300 = vld [vmem:[#allocation2 + $0x10] sm:$0xff]
        %v301 = vld [vmem:[#allocation2 + $0x18] sm:$0xff]
        %v302 = vsub.f32 %v261, %v298
        %v303 = vsub.f32 %v262, %v299
        %v304 = vsub.f32 %v263, %v300
        %v305 = vsub.f32 %v264, %v301
        %s306 = scalar_select %p277, 1, 0
        %v307 = vstv %s306
        %vm308 = vcmp.eq.s32.totalorder %v307, 1
        %313 = vrot.lane.b32.xlu0 %v302, 1
        %v314 = vpop.permute.xlu0 %313
        %315 = vrot.lane.b32.xlu0 %v303, 1
        %v316 = vpop.permute.xlu0 %315
        %317 = vrot.lane.b32.xlu0 %v304, 1
        %v318 = vpop.permute.xlu0 %317
        %319 = vrot.lane.b32.xlu0 %v305, 1
        %v320 = vpop.permute.xlu0 %319
        %v325 = vsel %vm308, %v294, %v314
        %v326 = vsel %vm308, %v295, %v316
        %v327 = vsel %vm308, %v296, %v318
        %v328 = vsel %vm308, %v297, %v320
        %v329 = vlaneseq
        %v330 = vand.u32 %v329, 127
        %vm331 = vcmp.eq.s32.totalorder %v330, 0
        %v332 = vsel %vm331, 1, 0
        %vm333 = vcmp.eq.s32.totalorder %v332, 1
        %335 = vset.pattern.permute.xlu0 1
        %336 = vperm.xlu0 %335, %v325
        %v337 = vpop.permute.xlu0 %336
        %340 = vset.pattern.permute.xlu0 1
        %341 = vperm.xlu0 %340, %v326
        %v342 = vpop.permute.xlu0 %341
        %345 = vset.pattern.permute.xlu0 1
        %346 = vperm.xlu0 %345, %v327
        %v347 = vpop.permute.xlu0 %346
        %350 = vset.pattern.permute.xlu0 1
        %351 = vperm.xlu0 %350, %v328
        %v352 = vpop.permute.xlu0 %351
        %v354 = vsel %vm333, %v337, %v273
        %v355 = vsel %vm333, %v342, %v274
        %v356 = vsel %vm333, %v347, %v275
        %v357 = vsel %vm333, %v352, %v276
        %vm358 = vcmask 7168
        %359 = vst.msk [vmem:[#allocation2] sm:$0xff] %vm358, %v283
        %360 = vst.msk [vmem:[#allocation2 + $0x8] sm:$0xff] %vm358, %v285
        %361 = vst.msk [vmem:[#allocation2 + $0x10] sm:$0xff] %vm358, %v287
        %362 = vst.msk [vmem:[#allocation2 + $0x18] sm:$0xff] %vm358, %v289
        %v363 = vld [vmem:[%s1] sm:$0xf]
        %v364 = vld [vmem:[%s1 + $0x4] sm:$0xf]
        %v365 = vld [vmem:[%s1 + $0x8] sm:$0xf]
        %v366 = vld [vmem:[%s1 + $0xc] sm:$0xf]
        %v367 = vpack.c.bf16 %v262, %v261
        %v368 = vpack.c.bf16 %v264, %v263
        %v369 = vld [vmem:[%s3] sm:$0xff]
        %v370 = vld [vmem:[%s3 + $0x8] sm:$0xff]
        %v371 = vld [vmem:[%s3 + $0x10] sm:$0xff]
        %v372 = vld [vmem:[%s3 + $0x18] sm:$0xff]
        %374 = vset.pattern.permute.xlu0 0
        %375 = vperm.xlu0 %374, %v369
        %v376 = vpop.permute.xlu0 %375
        %379 = vset.pattern.permute.xlu0 0
        %380 = vperm.xlu0 %379, %v370
        %v381 = vpop.permute.xlu0 %380
        %384 = vset.pattern.permute.xlu0 0
        %385 = vperm.xlu0 %384, %v371
        %v386 = vpop.permute.xlu0 %385
        %389 = vset.pattern.permute.xlu0 0
        %390 = vperm.xlu0 %389, %v372
        %v391 = vpop.permute.xlu0 %390
        %v397 = vunpack.c.l.b16 %v363
        %v398 = vunpack.c.l.b16 %v364
        %v399 = vunpack.c.l.b16 %v365
        %v400 = vunpack.c.l.b16 %v366
        %v401 = vpack.c.b16 %v398, %v397
        %v402 = vpack.c.b16 %v400, %v399
        %vm403 = vcmask 261120
        %v405 = vsel %vm403, %v401, 0
        %v408 = vsel %vm403, %v402, 0
        %410 = vmatprep.subr.bf16.mxu0 0
        %411 = vmatpush1.bf16.msra.mxu0 0
        %412 = vmatprep.subr.bf16.mxu0 0
        %413 = vmatpush1.bf16.msra.mxu0 0
        %414 = vmatprep.subr.bf16.mxu0 0
        %415 = vmatpush1.bf16.msra.mxu0 0
        %416 = vmatprep.subr.bf16.mxu0 0
        %417 = vmatpush1.bf16.msra.mxu0 0
        %418 = vmatprep.subr.bf16.mxu0 0
        %419 = vmatpush1.bf16.msra.mxu0 0
        %420 = vmatprep.subr.bf16.mxu0 0
        %421 = vmatpush1.bf16.msra.mxu0 0
        %422 = vmatprep.subr.bf16.mxu0 0
        %423 = vmatpush1.bf16.msra.mxu0 %v368
        %424 = vmatprep.subr.bf16.mxu0 0
        %425 = vmatpush1.bf16.msra.mxu0 %v367
        %426 = vmatprep.subr.bf16.mxu0 0
        %427 = vmatpush2.bf16.msra.mxu0 0
        %428 = vmatprep.subr.bf16.mxu0 0
        %429 = vmatpush2.bf16.msra.mxu0 0
        %430 = vmatprep.subr.bf16.mxu0 0
        %431 = vmatpush2.bf16.msra.mxu0 0
        %432 = vmatprep.subr.bf16.mxu0 0
        %433 = vmatpush2.bf16.msra.mxu0 0
        %434 = vmatprep.subr.bf16.mxu0 0
        %435 = vmatpush2.bf16.msra.mxu0 0
        %436 = vmatprep.subr.bf16.mxu0 0
        %437 = vmatpush2.bf16.msra.mxu0 0
        %438 = vmatprep.subr.bf16.mxu0 0
        %439 = vmatpush2.bf16.msra.mxu0 0
        %440 = vmatprep.subr.bf16.mxu0 0
        %441 = vmatpush2.bf16.msra.mxu0 0
        %442 = vmatprep.mubr.bf16.mxu0 0
        %443 = vmatmul.mubr.bf16.gmra.mxu0 %v405
        %v444 = vpop.f32.mrf.mxu0
        %v445 = vadd.f32 %v376, %v444
        %v446 = vpop.f32.mrf.mxu0
        %v447 = vpop.f32.mrf.mxu0
        %v448 = vadd.f32 %v381, %v447
        %v449 = vpop.f32.mrf.mxu0
        %450 = vmatprep.mubr.bf16.mxu0 0
        %451 = vmatmul.mubr.bf16.gmra.mxu0 %v408
        %v452 = vpop.f32.mrf.mxu0
        %v453 = vadd.f32 %v386, %v452
        %v454 = vpop.f32.mrf.mxu0
        %v455 = vpop.f32.mrf.mxu0
        %v456 = vadd.f32 %v391, %v455
        %v457 = vpop.f32.mrf.mxu0
        %458 = vdwg.mxu0
        %v459 = vld [vmem:[%s2] sm:$0xf]
        %v460 = vld [vmem:[%s2 + $0x4] sm:$0xf]
        %v461 = vld [vmem:[%s2 + $0x8] sm:$0xf]
        %v462 = vld [vmem:[%s2 + $0xc] sm:$0xf]
        %v463 = vpack.c.bf16 %v355, %v354
        %v464 = vpack.c.bf16 %v357, %v356
        %v465 = vld [vmem:[%s4] sm:$0xff]
        %v466 = vld [vmem:[%s4 + $0x8] sm:$0xff]
        %v467 = vld [vmem:[%s4 + $0x10] sm:$0xff]
        %v468 = vld [vmem:[%s4 + $0x18] sm:$0xff]
        %470 = vset.pattern.permute.xlu0 0
        %471 = vperm.xlu0 %470, %v465
        %v472 = vpop.permute.xlu0 %471
        %475 = vset.pattern.permute.xlu0 0
        %476 = vperm.xlu0 %475, %v466
        %v477 = vpop.permute.xlu0 %476
        %480 = vset.pattern.permute.xlu0 0
        %481 = vperm.xlu0 %480, %v467
        %v482 = vpop.permute.xlu0 %481
        %485 = vset.pattern.permute.xlu0 0
        %486 = vperm.xlu0 %485, %v468
        %v487 = vpop.permute.xlu0 %486
        %v493 = vunpack.c.l.b16 %v459
        %v494 = vunpack.c.l.b16 %v460
        %v495 = vunpack.c.l.b16 %v461
        %v496 = vunpack.c.l.b16 %v462
        %v497 = vpack.c.b16 %v494, %v493
        %v498 = vpack.c.b16 %v496, %v495
        %v500 = vsel %vm403, %v497, 0
        %v503 = vsel %vm403, %v498, 0
        %505 = vmatprep.subr.bf16.mxu0 0
        %506 = vmatpush1.bf16.msra.mxu0 0
        %507 = vmatprep.subr.bf16.mxu0 0
        %508 = vmatpush1.bf16.msra.mxu0 0
        %509 = vmatprep.subr.bf16.mxu0 0
        %510 = vmatpush1.bf16.msra.mxu0 0
        %511 = vmatprep.subr.bf16.mxu0 0
        %512 = vmatpush1.bf16.msra.mxu0 0
        %513 = vmatprep.subr.bf16.mxu0 0
        %514 = vmatpush1.bf16.msra.mxu0 0
        %515 = vmatprep.subr.bf16.mxu0 0
        %516 = vmatpush1.bf16.msra.mxu0 0
        %517 = vmatprep.subr.bf16.mxu0 0
        %518 = vmatpush1.bf16.msra.mxu0 %v464
        %519 = vmatprep.subr.bf16.mxu0 0
        %520 = vmatpush1.bf16.msra.mxu0 %v463
        %521 = vmatprep.subr.bf16.mxu0 0
        %522 = vmatpush2.bf16.msra.mxu0 0
        %523 = vmatprep.subr.bf16.mxu0 0
        %524 = vmatpush2.bf16.msra.mxu0 0
        %525 = vmatprep.subr.bf16.mxu0 0
        %526 = vmatpush2.bf16.msra.mxu0 0
        %527 = vmatprep.subr.bf16.mxu0 0
        %528 = vmatpush2.bf16.msra.mxu0 0
        %529 = vmatprep.subr.bf16.mxu0 0
        %530 = vmatpush2.bf16.msra.mxu0 0
        %531 = vmatprep.subr.bf16.mxu0 0
        %532 = vmatpush2.bf16.msra.mxu0 0
        %533 = vmatprep.subr.bf16.mxu0 0
        %534 = vmatpush2.bf16.msra.mxu0 0
        %535 = vmatprep.subr.bf16.mxu0 0
        %536 = vmatpush2.bf16.msra.mxu0 0
        %537 = vmatprep.mubr.bf16.mxu0 0
        %538 = vmatmul.mubr.bf16.gmra.mxu0 %v500
        %v539 = vpop.f32.mrf.mxu0
        %v540 = vadd.f32 %v472, %v539
        %v541 = vpop.f32.mrf.mxu0
        %v542 = vpop.f32.mrf.mxu0
        %v543 = vadd.f32 %v477, %v542
        %v544 = vpop.f32.mrf.mxu0
        %545 = vmatprep.mubr.bf16.mxu0 0
        %546 = vmatmul.mubr.bf16.gmra.mxu0 %v503
        %v547 = vpop.f32.mrf.mxu0
        %v548 = vadd.f32 %v482, %v547
        %v549 = vpop.f32.mrf.mxu0
        %v550 = vpop.f32.mrf.mxu0
        %v551 = vadd.f32 %v487, %v550
        %v552 = vpop.f32.mrf.mxu0
        %553 = vdwg.mxu0
        %v554 = vmul.f32 %v445, %v445
        %v555 = vmul.f32 %v448, %v448
        %v556 = vmul.f32 %v453, %v453
        %v557 = vmul.f32 %v456, %v456
        %v558 = vmul.f32 %v445, %v554
        %v559 = vmul.f32 %v448, %v555
        %v560 = vmul.f32 %v453, %v556
        %v561 = vmul.f32 %v456, %v557
        %v562 = vmul.f32 %v558, 0.044715
        %v563 = vmul.f32 %v559, 0.044715
        %v564 = vmul.f32 %v560, 0.044715
        %v565 = vmul.f32 %v561, 0.044715
        %v566 = vadd.f32 %v445, %v562
        %v567 = vadd.f32 %v448, %v563
        %v568 = vadd.f32 %v453, %v564
        %v569 = vadd.f32 %v456, %v565
        %v570 = vmul.f32 %v566, 0.7978846
        %v571 = vmul.f32 %v567, 0.7978846
        %v572 = vmul.f32 %v568, 0.7978846
        %v573 = vmul.f32 %v569, 0.7978846
        %v574 = vtanh.pop %v570
        %v575 = vtanh.pop %v571
        %v576 = vtanh.pop %v572
        %v577 = vtanh.pop %v573
        %v578 = vadd.f32 %v574, 1.0
        %v579 = vadd.f32 %v575, 1.0
        %v580 = vadd.f32 %v576, 1.0
        %v581 = vadd.f32 %v577, 1.0
        %v582 = vmul.f32 %v578, 0.5
        %v583 = vmul.f32 %v579, 0.5
        %v584 = vmul.f32 %v580, 0.5
        %v585 = vmul.f32 %v581, 0.5
        %v586 = vmul.f32 %v445, %v582
        %v587 = vmul.f32 %v448, %v583
        %v588 = vmul.f32 %v453, %v584
        %v589 = vmul.f32 %v456, %v585
        %v590 = vmul.f32 %v540, %v540
        %v591 = vmul.f32 %v543, %v543
        %v592 = vmul.f32 %v548, %v548
        %v593 = vmul.f32 %v551, %v551
        %v594 = vmul.f32 %v540, %v590
        %v595 = vmul.f32 %v543, %v591
        %v596 = vmul.f32 %v548, %v592
        %v597 = vmul.f32 %v551, %v593
        %v598 = vmul.f32 %v594, 0.044715
        %v599 = vmul.f32 %v595, 0.044715
        %v600 = vmul.f32 %v596, 0.044715
        %v601 = vmul.f32 %v597, 0.044715
        %v602 = vadd.f32 %v540, %v598
        %v603 = vadd.f32 %v543, %v599
        %v604 = vadd.f32 %v548, %v600
        %v605 = vadd.f32 %v551, %v601
        %v606 = vmul.f32 %v602, 0.7978846
        %v607 = vmul.f32 %v603, 0.7978846
        %v608 = vmul.f32 %v604, 0.7978846
        %v609 = vmul.f32 %v605, 0.7978846
        %v610 = vtanh.pop %v606
        %v611 = vtanh.pop %v607
        %v612 = vtanh.pop %v608
        %v613 = vtanh.pop %v609
        %v614 = vadd.f32 %v610, 1.0
        %v615 = vadd.f32 %v611, 1.0
        %v616 = vadd.f32 %v612, 1.0
        %v617 = vadd.f32 %v613, 1.0
        %v618 = vmul.f32 %v614, 0.5
        %v619 = vmul.f32 %v615, 0.5
        %v620 = vmul.f32 %v616, 0.5
        %v621 = vmul.f32 %v617, 0.5
        %v622 = vmul.f32 %v540, %v618
        %v623 = vmul.f32 %v543, %v619
        %v624 = vmul.f32 %v548, %v620
        %v625 = vmul.f32 %v551, %v621
        %v626 = vadd.f32 %v261, %v586
        %v627 = vadd.f32 %v262, %v587
        %v628 = vadd.f32 %v263, %v588
        %v629 = vadd.f32 %v264, %v589
        %v630 = vadd.f32 %v626, %v622
        %v631 = vadd.f32 %v627, %v623
        %v632 = vadd.f32 %v628, %v624
        %v633 = vadd.f32 %v629, %v625
        %634 = vst [vmem:[%s259] sm:$0xff] %v630
        %635 = vst [vmem:[%s259 + $0x8] sm:$0xff] %v631
        %636 = vst [vmem:[%s259 + $0x10] sm:$0xff] %v632
        %637 = vst [vmem:[%s259 + $0x18] sm:$0xff] %v633
        %s638 = sand.u32 %s156, 1
        %s639 = scalar_lea.sflag [#allocation5], %s638
        %s640 = sand.u32 %s156, 1
        %s641 = smul.addr %s640, 32
        %s642 = scalar_lea.vmem [#allocation6], %s641
        // Predicated region
        $region45: #{tpu_custom_call.1} parent=39 // pred_check
          %p643 = pneg %p166
        $region46: #{tpu_custom_call.1} parent=39 // pred_check_branch
          %645 = sbr.rel (%p643) target = $region48
        $region47: #{tpu_custom_call.1} parent=39 // pred_region
          %s647 = ssub.s32 512, 512
          %648 = vsyncadd %s639, %s647
          %s649 = smul.addr %s26, 8
          %s650 = sadd.s32 %s27, %s649
          %s651 = smul.addr %s650, 128
          %s652 = scalar_lea.hbm %s5, %s651
          %s653 = sshll.u32 %s642, 4
          %s654 = int_to_ptr.vmem [resolvable:$true] %s653
          %659 = dma.vmem_to_hbm [thread:$0]  %s654, 512, %s652, %s639, 128, 256, 8
        $region48: #{tpu_custom_call.1} parent=39 // pred_fallthru
          _
      $region40: #{tpu_custom_call.1} parent=5 // pred_fallthru
        _
      %p660 = scmp.le.s32.totalorder 2, %s17
      // Predicated region
      $region49: #{tpu_custom_call.1} parent=5 // pred_check
        %p661 = pneg %p660
      $region50: #{tpu_custom_call.1} parent=5 // pred_check_branch
        %663 = sbr.rel (%p661) target = $region52
      $region51: #{tpu_custom_call.1} parent=5 // pred_region
        %s664 = ssub.s32 %s17, 2
        // Predicated region
        $region53: #{tpu_custom_call.1} parent=51 // pred_check
          %p665 = pneg %p172
        $region54: #{tpu_custom_call.1} parent=51 // pred_check_branch
          %667 = sbr.rel (%p665) target = $region56
        $region55: #{tpu_custom_call.1} parent=51 // pred_region
          %s668 = sand.u32 %s157, 1
          %s669 = scalar_lea.sflag [#allocation5], %s668
          %s670 = sand.u32 %s157, 1
          %s671 = smul.addr %s670, 32
          %s672 = scalar_lea.vmem [#allocation6], %s671
          %673 = dma.done %s669, 512
        $region56: #{tpu_custom_call.1} parent=51 // pred_fallthru
          _
      $region52: #{tpu_custom_call.1} parent=5 // pred_fallthru
        _
    $region6: #{tpu_custom_call.1} parent=1 // loop_footer
      %s21 = sadd.s32 1, %s17
    $region7: #{tpu_custom_call.1} parent=1 // loop_footer_branch
      %16 = sbr.rel target = $region3
    $region8: #{tpu_custom_call.1} parent=1 // loop_exit
      _
    %674 = vsyncpa [#allocation4], 1
    %s675 = scalar_lea.sflag [#allocation4], 1
    %676 = vsyncpa %s675, 1
    %677 = vsyncpa [#allocation5], 1
    %s678 = scalar_lea.sflag [#allocation5], 1
    %679 = vsyncpa %s678, 1

</llo_original>
